<compile_context>
chip_gen: v7x
topology: tpu7x:2x2x1
jax: 0.10.0
libtpu: 0.0.40
codegen_flags: <defaults>
</compile_context>

<pallas_src>
import jax
import jax.numpy as jnp
from jax.experimental import pallas as pl
from jax.experimental.pallas import tpu as pltpu

_MAX_TILE_B = 512   # batch-tile cap (rows); overhead-dominated kernel -> fat tiles


def _qnet_kernel(x_ref, w1_ref, b1_ref, w2_ref, b2_ref, w3_ref, b3_ref, o_ref):
    # ---- Layer 1: one bf16 MXU matmul (K pre-padded 49->64), f32 accumulate,
    # f32 bias + ReLU on the VPU.
    h1 = jnp.dot(x_ref[...], w1_ref[...], preferred_element_type=jnp.float32)
    h1 = jnp.maximum(h1 + b1_ref[...], 0.0)

    # ---- Layer 2: bf16 MXU matmul, f32 accumulate, f32 bias + ReLU.
    h2 = jnp.dot(h1.astype(jnp.bfloat16), w2_ref[...],
                 preferred_element_type=jnp.float32)
    h2 = jnp.maximum(h2 + b2_ref[...], 0.0)

    # ---- Layer 3 (out_features == 1): elementwise multiply + lane reduction
    # (VPU/XLU) instead of an N=1 MXU matmul.
    q = jnp.sum(h2 * w3_ref[...], axis=-1, keepdims=True) + b3_ref[...]

    # Plain [tile_b, 1] store (masked vst, 1 value/row — negligible).
    o_ref[...] = q.astype(o_ref.dtype)


def _round_up(x, m):
    return (x + m - 1) // m * m


def _cdiv(a, b):
    return -(-a // b)


def prepare_params(w1, b1, w2, b2, w3, b3):
    """One-time conversion into kernel layout.

    W1 is zero-padded row-wise to a multiple of 16 (bf16 sublane packing) so
    layer 1 is a single dense matmul against the zero-padded concat input;
    matmul weights are bf16 (f32 MXU accumulation), biases and the final
    256-vector stay f32 for VPU elementwise work.
    """
    d_in = w1.shape[0]
    k_pad = _round_up(d_in, 16)
    w1_pad = jnp.pad(w1, ((0, k_pad - d_in), (0, 0))).astype(jnp.bfloat16)
    return (w1_pad,
            b1.reshape(1, -1).astype(jnp.float32),
            w2.astype(jnp.bfloat16),
            b2.reshape(1, -1).astype(jnp.float32),
            w3.reshape(1, -1).astype(jnp.float32),   # [256, 1] -> [1, 256]
            b3.reshape(1, 1).astype(jnp.float32))


def _choose_tile(B):
    """Balanced sublane-aligned batch tiles; grid >= 2 when B > 16 (v7x 2 TCs)."""
    b8 = _round_up(B, 8)
    n_tiles = max(_cdiv(b8, _MAX_TILE_B), 2 if B > 16 else 1)
    tile_b = _round_up(_cdiv(b8, n_tiles), 8)
    b_pad = _round_up(b8, tile_b)
    return tile_b, b_pad


@jax.jit
def soft_q_forward(visual_feature, joints, action, params):
    """SoftQNetwork.forward with visual_feature provided."""
    w1, b1, w2, b2, w3, b3 = params
    B = visual_feature.shape[0]
    k_pad = w1.shape[0]

    tile_b, b_pad = _choose_tile(B)

    # One fused concat + bf16 cast + pad (rows -> b_pad, cols 49 -> k_pad).
    x = jnp.concatenate([visual_feature, joints, action], axis=1).astype(jnp.bfloat16)
    x = jnp.pad(x, ((0, b_pad - B), (0, k_pad - x.shape[1])))

    def const_spec(shape):
        return pl.BlockSpec(shape, lambda i: (0, 0))

    out = pl.pallas_call(
        _qnet_kernel,
        out_shape=jax.ShapeDtypeStruct((b_pad, 1), jnp.float32),
        grid_spec=pl.GridSpec(
            grid=(b_pad // tile_b,),
            in_specs=[
                pl.BlockSpec((tile_b, k_pad), lambda i: (i, 0)),   # activations stream
                const_spec(w1.shape), const_spec(b1.shape),        # weights resident
                const_spec(w2.shape), const_spec(b2.shape),
                const_spec(w3.shape), const_spec(b3.shape),
            ],
            out_specs=pl.BlockSpec((tile_b, 1), lambda i: (i, 0)),
        ),
        compiler_params=pltpu.CompilerParams(
            dimension_semantics=("parallel",)),   # v7x: 2 TCs split the batch
    )(x, w1, b1, w2, b2, w3, b3)

    return out[:B]


def init_linear(key, fan_in, fan_out):
    """Deterministic init matching torch.nn.Linear's U(-1/sqrt(fan_in), +)."""
    kw, kb = jax.random.split(key)
    bound = 1.0 / jnp.sqrt(jnp.float32(fan_in))
    w = jax.random.uniform(kw, (fan_in, fan_out), jnp.float32, -bound, bound)
    b = jax.random.uniform(kb, (1, fan_out), jnp.float32, -bound, bound)
    return w, b


if __name__ == "__main__":
    # Module-consistent small shapes:
    #   encoder.out_dim = 32, joints (state_dim) = 9, action_dim = 8
    #   MLP: (32 + 9 + 8) -> 512 -> 256 -> 1
    B = 4
    OUT_DIM, STATE_DIM, ACT_DIM = 32, 9, 8
    D_IN = OUT_DIM + STATE_DIM + ACT_DIM
    H1, H2, H3 = 512, 256, 1

    root = jax.random.PRNGKey(0)
    k_vf, k_j, k_a, k_l1, k_l2, k_l3 = jax.random.split(root, 6)

    visual_feature = jax.random.normal(k_vf, (B, OUT_DIM), jnp.float32)
    joints = jax.random.normal(k_j, (B, STATE_DIM), jnp.float32)
    action = jax.random.uniform(k_a, (B, ACT_DIM), jnp.float32, -1.0, 1.0)

    w1, b1 = init_linear(k_l1, D_IN, H1)
    w2, b2 = init_linear(k_l2, H1, H2)
    w3, b3 = init_linear(k_l3, H2, H3)

    params = prepare_params(w1, b1, w2, b2, w3, b3)

    q = soft_q_forward(visual_feature, joints, action, params)
    q = jax.block_until_ready(q)
    assert q.shape == (B, 1)

    # Reference 1: pure-JAX forward with the SAME precision path (bf16 operands,
    # f32 accumulation, same zero-padded W1) -> tight tolerance.
    w1p, b1f, w2b, b2f, w3r, b3f = params
    x_bf = jnp.concatenate([visual_feature, joints, action], axis=1).astype(jnp.bfloat16)
    x_bf = jnp.pad(x_bf, ((0, 0), (0, w1p.shape[0] - x_bf.shape[1])))
    h1 = jnp.maximum(
        jnp.dot(x_bf, w1p, preferred_element_type=jnp.float32) + b1f, 0.0)
    h2 = jnp.maximum(
        jnp.dot(h1.astype(jnp.bfloat16), w2b, preferred_element_type=jnp.float32) + b2f, 0.0)
    ref_bf16 = jnp.sum(h2 * w3r, axis=-1, keepdims=True) + b3f
    assert jnp.allclose(q, ref_bf16, atol=2e-3, rtol=2e-3), "mismatch vs bf16-matched reference"

    # Reference 2: full-f32 PyTorch-equivalent forward (looser tol: bf16 weights).
    x = jnp.concatenate([visual_feature, joints, action], axis=1)
    ref = jnp.maximum(x @ w1 + b1, 0.0)
    ref = jnp.maximum(ref @ w2 + b2, 0.0)
    ref = ref @ w3 + b3
    assert jnp.allclose(q, ref, atol=5e-2, rtol=5e-2), "mismatch vs f32 reference"

    print("KERNEL_OK")
</pallas_src>

<mosaic_0001>
module attributes {stable_mosaic.version = 11 : i64} {
  func.func @_qnet_kernel(%arg0: i32, %arg1: memref<8x64xbf16, #tpu.memory_space<vmem>>, %arg2: memref<64x512xbf16, #tpu.memory_space<vmem>>, %arg3: memref<1x512xf32, #tpu.memory_space<vmem>>, %arg4: memref<512x256xbf16, #tpu.memory_space<vmem>>, %arg5: memref<1x256xf32, #tpu.memory_space<vmem>>, %arg6: memref<1x256xf32, #tpu.memory_space<vmem>>, %arg7: memref<1x1xf32, #tpu.memory_space<vmem>>, %arg8: memref<8x1xf32, #tpu.memory_space<vmem>>) attributes {dimension_semantics = [#tpu.dimension_semantics<parallel>], iteration_bounds = array<i64: 1>, scalar_prefetch = 0 : i64, scratch_operands = 0 : i64, tpu.core_type = #tpu.core_type<tc>, window_params = [{transform_indices = @transform_0, window_bounds = array<i64: 8, 64>}, {pipeline_mode = #tpu.pipeline_mode<synchronous>, transform_indices = @transform_1, window_bounds = array<i64: 64, 512>}, {pipeline_mode = #tpu.pipeline_mode<synchronous>, transform_indices = @transform_2, window_bounds = array<i64: 1, 512>}, {pipeline_mode = #tpu.pipeline_mode<synchronous>, transform_indices = @transform_3, window_bounds = array<i64: 512, 256>}, {pipeline_mode = #tpu.pipeline_mode<synchronous>, transform_indices = @transform_4, window_bounds = array<i64: 1, 256>}, {pipeline_mode = #tpu.pipeline_mode<synchronous>, transform_indices = @transform_5, window_bounds = array<i64: 1, 256>}, {pipeline_mode = #tpu.pipeline_mode<synchronous>, transform_indices = @transform_6, window_bounds = array<i64: 1, 1>}, {transform_indices = @transform_7, window_bounds = array<i64: 8, 1>}]} {
    %c0 = arith.constant 0 : index
    %c0_0 = arith.constant 0 : index
    %0 = vector.load %arg1[%c0, %c0_0] : memref<8x64xbf16, #tpu.memory_space<vmem>>, vector<8x64xbf16>
    %c0_1 = arith.constant 0 : index
    %c0_2 = arith.constant 0 : index
    %1 = vector.load %arg2[%c0_1, %c0_2] : memref<64x512xbf16, #tpu.memory_space<vmem>>, vector<64x512xbf16>
    %cst = arith.constant dense<0.000000e+00> : vector<8x512xf32>
    %2 = tpu.matmul %0, %1, %cst {dimension_numbers = #tpu.dot_dimension_numbers<[1], [0], [0], [1], [0, 0, 1, 1], [], []>} : vector<8x64xbf16>, vector<64x512xbf16>, vector<8x512xf32> -> vector<8x512xf32>
    %c0_3 = arith.constant 0 : index
    %c0_4 = arith.constant 0 : index
    %3 = vector.load %arg3[%c0_3, %c0_4] : memref<1x512xf32, #tpu.memory_space<vmem>>, vector<1x512xf32>
    %4 = vector.broadcast %3 : vector<1x512xf32> to vector<8x512xf32>
    %5 = arith.addf %2, %4 : vector<8x512xf32>
    %cst_5 = arith.constant 0.000000e+00 : f32
    %6 = vector.broadcast %cst_5 : f32 to vector<8x512xf32>
    %7 = arith.maximumf %5, %6 : vector<8x512xf32>
    %8 = arith.truncf %7 : vector<8x512xf32> to vector<8x512xbf16>
    %c0_6 = arith.constant 0 : index
    %c0_7 = arith.constant 0 : index
    %9 = vector.load %arg4[%c0_6, %c0_7] : memref<512x256xbf16, #tpu.memory_space<vmem>>, vector<512x256xbf16>
    %cst_8 = arith.constant dense<0.000000e+00> : vector<8x256xf32>
    %10 = tpu.matmul %8, %9, %cst_8 {dimension_numbers = #tpu.dot_dimension_numbers<[1], [0], [0], [1], [0, 0, 1, 1], [], []>} : vector<8x512xbf16>, vector<512x256xbf16>, vector<8x256xf32> -> vector<8x256xf32>
    %c0_9 = arith.constant 0 : index
    %c0_10 = arith.constant 0 : index
    %11 = vector.load %arg5[%c0_9, %c0_10] : memref<1x256xf32, #tpu.memory_space<vmem>>, vector<1x256xf32>
    %12 = vector.broadcast %11 : vector<1x256xf32> to vector<8x256xf32>
    %13 = arith.addf %10, %12 : vector<8x256xf32>
    %cst_11 = arith.constant 0.000000e+00 : f32
    %14 = vector.broadcast %cst_11 : f32 to vector<8x256xf32>
    %15 = arith.maximumf %13, %14 : vector<8x256xf32>
    %c0_12 = arith.constant 0 : index
    %c0_13 = arith.constant 0 : index
    %16 = vector.load %arg6[%c0_12, %c0_13] : memref<1x256xf32, #tpu.memory_space<vmem>>, vector<1x256xf32>
    %17 = vector.broadcast %16 : vector<1x256xf32> to vector<8x256xf32>
    %18 = arith.mulf %15, %17 : vector<8x256xf32>
    %cst_14 = arith.constant dense<0.000000e+00> : vector<8xf32>
    %19 = vector.multi_reduction <add>, %18, %cst_14 [1] : vector<8x256xf32> to vector<8xf32>
    %20 = vector.shape_cast %19 : vector<8xf32> to vector<8x1xf32>
    %c0_15 = arith.constant 0 : index
    %c0_16 = arith.constant 0 : index
    %21 = vector.load %arg7[%c0_15, %c0_16] : memref<1x1xf32, #tpu.memory_space<vmem>>, vector<1x1xf32>
    %22 = vector.broadcast %21 : vector<1x1xf32> to vector<8x1xf32>
    %23 = arith.addf %20, %22 : vector<8x1xf32>
    %c0_17 = arith.constant 0 : index
    %c0_18 = arith.constant 0 : index
    %24 = vector.load %arg8[%c0_17, %c0_18] : memref<8x1xf32, #tpu.memory_space<vmem>>, vector<8x1xf32>
    tpu.vector_store %arg8[%c0_17, %c0_18], %23 {strides = array<i32>} : memref<8x1xf32, #tpu.memory_space<vmem>>, vector<8x1xf32>,
    return
  }
  func.func @transform_0(%arg0: i32) -> (i32, i32) {
    %c0_i32 = arith.constant 0 : i32
    %c0_i32_0 = arith.constant 0 : i32
    return %arg0, %c0_i32 : i32, i32
  }
  func.func @transform_1(%arg0: i32) -> (i32, i32) {
    %c0_i32 = arith.constant 0 : i32
    %c0_i32_0 = arith.constant 0 : i32
    %c0_i32_1 = arith.constant 0 : i32
    return %c0_i32, %c0_i32_0 : i32, i32
  }
  func.func @transform_2(%arg0: i32) -> (i32, i32) {
    %c0_i32 = arith.constant 0 : i32
    %c0_i32_0 = arith.constant 0 : i32
    %c0_i32_1 = arith.constant 0 : i32
    return %c0_i32, %c0_i32_0 : i32, i32
  }
  func.func @transform_3(%arg0: i32) -> (i32, i32) {
    %c0_i32 = arith.constant 0 : i32
    %c0_i32_0 = arith.constant 0 : i32
    %c0_i32_1 = arith.constant 0 : i32
    return %c0_i32, %c0_i32_0 : i32, i32
  }
  func.func @transform_4(%arg0: i32) -> (i32, i32) {
    %c0_i32 = arith.constant 0 : i32
    %c0_i32_0 = arith.constant 0 : i32
    %c0_i32_1 = arith.constant 0 : i32
    return %c0_i32, %c0_i32_0 : i32, i32
  }
  func.func @transform_5(%arg0: i32) -> (i32, i32) {
    %c0_i32 = arith.constant 0 : i32
    %c0_i32_0 = arith.constant 0 : i32
    %c0_i32_1 = arith.constant 0 : i32
    return %c0_i32, %c0_i32_0 : i32, i32
  }
  func.func @transform_6(%arg0: i32) -> (i32, i32) {
    %c0_i32 = arith.constant 0 : i32
    %c0_i32_0 = arith.constant 0 : i32
    %c0_i32_1 = arith.constant 0 : i32
    return %c0_i32, %c0_i32_0 : i32, i32
  }
  func.func @transform_7(%arg0: i32) -> (i32, i32) {
    %c0_i32 = arith.constant 0 : i32
    %c0_i32_0 = arith.constant 0 : i32
    return %arg0, %c0_i32 : i32, i32
  }
}

</mosaic_0001>

<llo_original>
// kernel: soft_q_forward.1
$region0: #{soft_q_forward.1}
  #allocation0 [shape = 'u32[]', space=smem, size = 0x4, offset = 0x4, fixed_abs, tag = 'smem constant byte address 0x4 - core index']
  #allocation1 [shape = 'u32[144,128]{1,0:T(1,128)}', space=vmem, size = 0x12000, scoped, tag = 'internal scratch']
  #allocation2 [shape = 'f32[1,1]{1,0:T(1,128)S(1)}', space=vmem, size = 0x200, scoped, tag = 'scoped memory for soft_q_forward.1']
  %s0 = inlined_call_operand.vmem [shape: bf16[8,64], index: 0, kind: input, shape index: {}]
  %s1 = inlined_call_operand.hbm [shape: bf16[64,512], index: 1, kind: input, shape index: {}]
  %s2 = inlined_call_operand.vmem [shape: f32[1,512], index: 2, kind: input, shape index: {}]
  %s3 = inlined_call_operand.hbm [shape: bf16[512,256], index: 3, kind: input, shape index: {}]
  %s4 = inlined_call_operand.vmem [shape: f32[1,256], index: 4, kind: input, shape index: {}]
  %s5 = inlined_call_operand.vmem [shape: f32[1,256], index: 5, kind: input, shape index: {}]
  %s6 = inlined_call_operand.<no memory space> [shape: f32[1,1], index: 6, kind: input, shape index: {}]
  %s7 = inlined_call_operand.vmem [shape: f32[8,1], index: 7, kind: output, shape index: {}]
  %s8 = sld [smem:[#allocation0]]
  $region46: #{soft_q_forward.1} parent=0
    _
  %s10 = ssub.s32 1, %s8
  %s11 = scalar_select 0, %s10, %s8
  %v12 = vstv %s6
  %13 = vst [vmem:[#allocation2] sm:$0x1] %v12
  $region1: #{soft_q_forward.1} parent=0
    #allocation3 [shape = 'u8[65536]{0}', space=vmem, size = 0x10000, scoped, tag = 'input window, operand 1, single buffered']
    #allocation4 [shape = 's32[1]{0}', space=sflag, size = 0x4, scoped, tag = 'scoped memory for soft_q_forward.1']
    #allocation5 [shape = 'u8[262144]{0}', space=vmem, size = 0x40000, scoped, tag = 'input window, operand 3, single buffered']
    #allocation6 [shape = 's32[1]{0}', space=sflag, size = 0x4, scoped, tag = 'scoped memory for soft_q_forward.1']
    %14 = vsyncpa [#allocation4], 0
    %15 = vsyncpa [#allocation6], 0
    // Predicated region
    $region2: #{soft_q_forward.1} parent=1 // pred_check
      _
    $region3: #{soft_q_forward.1} parent=1 // pred_check_branch
      %17 = sbr.rel (0) target = $region5
    $region4: #{soft_q_forward.1} parent=1 // pred_region
      _
    $region5: #{soft_q_forward.1} parent=1 // pred_fallthru
      _
    // Predicated region
    $region6: #{soft_q_forward.1} parent=1 // pred_check
      _
    $region7: #{soft_q_forward.1} parent=1 // pred_check_branch
      %19 = sbr.rel (0) target = $region9
    $region8: #{soft_q_forward.1} parent=1 // pred_region
      %s21 = ssub.s32 2048, 2048
      %22 = vsyncadd [#allocation4], %s21
      %s23 = sshll.u32 [#allocation3], 4
      %s24 = int_to_ptr.vmem [resolvable:$true] %s23
      %29 = dma.hbm_to_vmem [thread:$0]  %s1, 2048, %s24, [#allocation4], 256, 256, 16
    $region9: #{soft_q_forward.1} parent=1 // pred_fallthru
      _
    // Predicated region
    $region10: #{soft_q_forward.1} parent=1 // pred_check
      _
    $region11: #{soft_q_forward.1} parent=1 // pred_check_branch
      %31 = sbr.rel (0) target = $region13
    $region12: #{soft_q_forward.1} parent=1 // pred_region
      _
    $region13: #{soft_q_forward.1} parent=1 // pred_fallthru
      _
    // Predicated region
    $region14: #{soft_q_forward.1} parent=1 // pred_check
      _
    $region15: #{soft_q_forward.1} parent=1 // pred_check_branch
      %33 = sbr.rel (0) target = $region17
    $region16: #{soft_q_forward.1} parent=1 // pred_region
      %s35 = ssub.s32 8192, 8192
      %36 = vsyncadd [#allocation6], %s35
      %s37 = sshll.u32 [#allocation5], 4
      %s38 = int_to_ptr.vmem [resolvable:$true] %s37
      %43 = dma.hbm_to_vmem [thread:$0]  %s3, 8192, %s38, [#allocation6], 128, 128, 8
    $region17: #{soft_q_forward.1} parent=1 // pred_fallthru
      _
    // Predicated region
    $region18: #{soft_q_forward.1} parent=1 // pred_check
      _
    $region19: #{soft_q_forward.1} parent=1 // pred_check_branch
      %45 = sbr.rel (0) target = $region21
    $region20: #{soft_q_forward.1} parent=1 // pred_region
      _
    $region21: #{soft_q_forward.1} parent=1 // pred_fallthru
      _
    // Predicated region
    $region22: #{soft_q_forward.1} parent=1 // pred_check
      _
    $region23: #{soft_q_forward.1} parent=1 // pred_check_branch
      %47 = sbr.rel (0) target = $region25
    $region24: #{soft_q_forward.1} parent=1 // pred_region
      _
    $region25: #{soft_q_forward.1} parent=1 // pred_fallthru
      _
    // Predicated region
    $region26: #{soft_q_forward.1} parent=1 // pred_check
      _
    $region27: #{soft_q_forward.1} parent=1 // pred_check_branch
      %49 = sbr.rel (0) target = $region29
    $region28: #{soft_q_forward.1} parent=1 // pred_region
      _
    $region29: #{soft_q_forward.1} parent=1 // pred_fallthru
      _
    // Predicated region
    $region30: #{soft_q_forward.1} parent=1 // pred_check
      _
    $region31: #{soft_q_forward.1} parent=1 // pred_check_branch
      %51 = sbr.rel (0) target = $region33
    $region32: #{soft_q_forward.1} parent=1 // pred_region
      %52 = dma.done [#allocation4], 2048
    $region33: #{soft_q_forward.1} parent=1 // pred_fallthru
      _
    // Predicated region
    $region34: #{soft_q_forward.1} parent=1 // pred_check
      _
    $region35: #{soft_q_forward.1} parent=1 // pred_check_branch
      %54 = sbr.rel (0) target = $region37
    $region36: #{soft_q_forward.1} parent=1 // pred_region
      %55 = dma.done [#allocation6], 8192
    $region37: #{soft_q_forward.1} parent=1 // pred_fallthru
      _
    %v57 = vld [vmem:[%s0] sm:$0xf]
    %v58 = vld [vmem:[#allocation3] sm:$0xff]
    %v59 = vld [vmem:[#allocation3 + $0x8] sm:$0xff]
    %v60 = vld [vmem:[#allocation3 + $0x10] sm:$0xff]
    %v61 = vld [vmem:[#allocation3 + $0x18] sm:$0xff]
    %v62 = vld [vmem:[#allocation3 + $0x20] sm:$0xff]
    %v63 = vld [vmem:[#allocation3 + $0x28] sm:$0xff]
    %v64 = vld [vmem:[#allocation3 + $0x30] sm:$0xff]
    %v65 = vld [vmem:[#allocation3 + $0x38] sm:$0xff]
    %v66 = vld [vmem:[#allocation3 + $0x40] sm:$0xff]
    %v67 = vld [vmem:[#allocation3 + $0x48] sm:$0xff]
    %v68 = vld [vmem:[#allocation3 + $0x50] sm:$0xff]
    %v69 = vld [vmem:[#allocation3 + $0x58] sm:$0xff]
    %v70 = vld [vmem:[#allocation3 + $0x60] sm:$0xff]
    %v71 = vld [vmem:[#allocation3 + $0x68] sm:$0xff]
    %v72 = vld [vmem:[#allocation3 + $0x70] sm:$0xff]
    %v73 = vld [vmem:[#allocation3 + $0x78] sm:$0xff]
    %v74 = vld [vmem:[%s2] sm:$0xf]
    %v76 = vlaneseq
    %v77 = vshrl.u32 %v76, 7
    %v78 = vsub.s32 0, %v77
    %v79 = vrot.slane %v74, %v78
    %v80 = vlaneseq
    %v81 = vshrl.u32 %v80, 7
    %v82 = vsub.s32 1, %v81
    %v83 = vrot.slane %v74, %v82
    %v84 = vlaneseq
    %v85 = vshrl.u32 %v84, 7
    %v86 = vsub.s32 2, %v85
    %v87 = vrot.slane %v74, %v86
    %v88 = vlaneseq
    %v89 = vshrl.u32 %v88, 7
    %v90 = vsub.s32 3, %v89
    %v91 = vrot.slane %v74, %v90
    %v112 = vunpack.c.l.b16 %v58
    %v113 = vunpack.c.h.b16 %v58
    %v114 = vunpack.c.l.b16 %v59
    %v115 = vunpack.c.h.b16 %v59
    %v116 = vunpack.c.l.b16 %v60
    %v117 = vunpack.c.h.b16 %v60
    %v118 = vunpack.c.l.b16 %v61
    %v119 = vunpack.c.h.b16 %v61
    %v120 = vunpack.c.l.b16 %v62
    %v121 = vunpack.c.h.b16 %v62
    %v122 = vunpack.c.l.b16 %v63
    %v123 = vunpack.c.h.b16 %v63
    %v124 = vunpack.c.l.b16 %v64
    %v125 = vunpack.c.h.b16 %v64
    %v126 = vunpack.c.l.b16 %v65
    %v127 = vunpack.c.h.b16 %v65
    %v128 = vunpack.c.l.b16 %v66
    %v129 = vunpack.c.h.b16 %v66
    %v130 = vunpack.c.l.b16 %v67
    %v131 = vunpack.c.h.b16 %v67
    %v132 = vunpack.c.l.b16 %v68
    %v133 = vunpack.c.h.b16 %v68
    %v134 = vunpack.c.l.b16 %v69
    %v135 = vunpack.c.h.b16 %v69
    %v136 = vunpack.c.l.b16 %v70
    %v137 = vunpack.c.h.b16 %v70
    %v138 = vunpack.c.l.b16 %v71
    %v139 = vunpack.c.h.b16 %v71
    %v140 = vunpack.c.l.b16 %v72
    %v141 = vunpack.c.h.b16 %v72
    %v142 = vunpack.c.l.b16 %v73
    %v143 = vunpack.c.h.b16 %v73
    %v144 = vpack.c.b16 %v116, %v112
    %v145 = vpack.c.b16 %v117, %v113
    %v146 = vpack.c.b16 %v118, %v114
    %v147 = vpack.c.b16 %v119, %v115
    %v148 = vpack.c.b16 %v124, %v120
    %v149 = vpack.c.b16 %v125, %v121
    %v150 = vpack.c.b16 %v126, %v122
    %v151 = vpack.c.b16 %v127, %v123
    %v152 = vpack.c.b16 %v132, %v128
    %v153 = vpack.c.b16 %v133, %v129
    %v154 = vpack.c.b16 %v134, %v130
    %v155 = vpack.c.b16 %v135, %v131
    %v156 = vpack.c.b16 %v140, %v136
    %v157 = vpack.c.b16 %v141, %v137
    %v158 = vpack.c.b16 %v142, %v138
    %v159 = vpack.c.b16 %v143, %v139
    %vm176 = vcmask 523264
    %v178 = vsel %vm176, %v57, 0
    %180 = vmatprep.subr.bf16.mxu0 %v145
    %181 = vmatpush1.bf16.msra.mxu0 %v144
    %182 = vmatprep.subr.bf16.mxu0 %v149
    %183 = vmatpush1.bf16.msra.mxu0 %v148
    %184 = vmatprep.subr.bf16.mxu0 %v153
    %185 = vmatpush1.bf16.msra.mxu0 %v152
    %186 = vmatprep.subr.bf16.mxu0 %v157
    %187 = vmatpush1.bf16.msra.mxu0 %v156
    %188 = vmatprep.subr.bf16.mxu0 0
    %189 = vmatpush1.bf16.msra.mxu0 0
    %190 = vmatprep.subr.bf16.mxu0 0
    %191 = vmatpush1.bf16.msra.mxu0 0
    %192 = vmatprep.subr.bf16.mxu0 0
    %193 = vmatpush1.bf16.msra.mxu0 0
    %194 = vmatprep.subr.bf16.mxu0 0
    %195 = vmatpush1.bf16.msra.mxu0 0
    %196 = vmatprep.subr.bf16.mxu0 0
    %197 = vmatpush1.bf16.msra.mxu0 0
    %198 = vmatprep.subr.bf16.mxu0 0
    %199 = vmatpush1.bf16.msra.mxu0 0
    %200 = vmatprep.subr.bf16.mxu0 0
    %201 = vmatpush1.bf16.msra.mxu0 0
    %202 = vmatprep.subr.bf16.mxu0 0
    %203 = vmatpush1.bf16.msra.mxu0 0
    %204 = vmatprep.subr.bf16.mxu0 0
    %205 = vmatpush1.bf16.msra.mxu0 0
    %206 = vmatprep.subr.bf16.mxu0 0
    %207 = vmatpush1.bf16.msra.mxu0 0
    %208 = vmatprep.subr.bf16.mxu0 0
    %209 = vmatpush1.bf16.msra.mxu0 0
    %210 = vmatprep.subr.bf16.mxu0 0
    %211 = vmatpush1.bf16.msra.mxu0 0
    %212 = vmatprep.mubr.bf16.mxu0 0
    %213 = vmatmul.mubr.bf16.gmra.mrb[0].mxu0 %v178
    %v214 = vpop.f32.mrb[0].mxu0
    %v215 = vadd.f32 %v79, %v214
    %v216 = vpop.f32.mrb[0].mxu0
    %v217 = vadd.f32 %v83, %v216
    %v218 = vpop.f32.mrb[0].mxu0
    %v219 = vpop.f32.mrb[0].mxu0
    %220 = vdwg.mxu0
    %221 = vmatprep.subr.bf16.mxu0 %v147
    %222 = vmatpush1.bf16.msra.mxu0 %v146
    %223 = vmatprep.subr.bf16.mxu0 %v151
    %224 = vmatpush1.bf16.msra.mxu0 %v150
    %225 = vmatprep.subr.bf16.mxu0 %v155
    %226 = vmatpush1.bf16.msra.mxu0 %v154
    %227 = vmatprep.subr.bf16.mxu0 %v159
    %228 = vmatpush1.bf16.msra.mxu0 %v158
    %229 = vmatprep.subr.bf16.mxu0 0
    %230 = vmatpush1.bf16.msra.mxu0 0
    %231 = vmatprep.subr.bf16.mxu0 0
    %232 = vmatpush1.bf16.msra.mxu0 0
    %233 = vmatprep.subr.bf16.mxu0 0
    %234 = vmatpush1.bf16.msra.mxu0 0
    %235 = vmatprep.subr.bf16.mxu0 0
    %236 = vmatpush1.bf16.msra.mxu0 0
    %237 = vmatprep.subr.bf16.mxu0 0
    %238 = vmatpush1.bf16.msra.mxu0 0
    %239 = vmatprep.subr.bf16.mxu0 0
    %240 = vmatpush1.bf16.msra.mxu0 0
    %241 = vmatprep.subr.bf16.mxu0 0
    %242 = vmatpush1.bf16.msra.mxu0 0
    %243 = vmatprep.subr.bf16.mxu0 0
    %244 = vmatpush1.bf16.msra.mxu0 0
    %245 = vmatprep.subr.bf16.mxu0 0
    %246 = vmatpush1.bf16.msra.mxu0 0
    %247 = vmatprep.subr.bf16.mxu0 0
    %248 = vmatpush1.bf16.msra.mxu0 0
    %249 = vmatprep.subr.bf16.mxu0 0
    %250 = vmatpush1.bf16.msra.mxu0 0
    %251 = vmatprep.subr.bf16.mxu0 0
    %252 = vmatpush1.bf16.msra.mxu0 0
    %253 = vmatprep.mubr.bf16.mxu0 0
    %254 = vmatmul.mubr.bf16.gmra.mrb[0].mxu0 %v178
    %v255 = vpop.f32.mrb[0].mxu0
    %v256 = vadd.f32 %v87, %v255
    %v257 = vpop.f32.mrb[0].mxu0
    %v258 = vadd.f32 %v91, %v257
    %v259 = vpop.f32.mrb[0].mxu0
    %v260 = vpop.f32.mrb[0].mxu0
    %261 = vdwg.mxu0
    %v262 = vmax.f32 %v215, 0.0
    %v263 = vmax.f32 %v217, 0.0
    %v264 = vmax.f32 %v256, 0.0
    %v265 = vmax.f32 %v258, 0.0
    %v266 = vpack.c.bf16 %v262, %v262
    %v267 = vpack.c.bf16 %v263, %v263
    %v268 = vpack.c.bf16 %v264, %v264
    %v269 = vpack.c.bf16 %v265, %v265
    %v270 = vld [vmem:[#allocation5] sm:$0xff]
    %v271 = vld [vmem:[#allocation5 + $0x8] sm:$0xff]
    %v272 = vld [vmem:[#allocation5 + $0x10] sm:$0xff]
    %v273 = vld [vmem:[#allocation5 + $0x18] sm:$0xff]
    %v274 = vld [vmem:[#allocation5 + $0x20] sm:$0xff]
    %v275 = vld [vmem:[#allocation5 + $0x28] sm:$0xff]
    %v276 = vld [vmem:[#allocation5 + $0x30] sm:$0xff]
    %v277 = vld [vmem:[#allocation5 + $0x38] sm:$0xff]
    %v278 = vld [vmem:[#allocation5 + $0x40] sm:$0xff]
    %v279 = vld [vmem:[#allocation5 + $0x48] sm:$0xff]
    %v280 = vld [vmem:[#allocation5 + $0x50] sm:$0xff]
    %v281 = vld [vmem:[#allocation5 + $0x58] sm:$0xff]
    %v282 = vld [vmem:[#allocation5 + $0x60] sm:$0xff]
    %v283 = vld [vmem:[#allocation5 + $0x68] sm:$0xff]
    %v284 = vld [vmem:[#allocation5 + $0x70] sm:$0xff]
    %v285 = vld [vmem:[#allocation5 + $0x78] sm:$0xff]
    %v286 = vld [vmem:[#allocation5 + $0x80] sm:$0xff]
    %v287 = vld [vmem:[#allocation5 + $0x88] sm:$0xff]
    %v288 = vld [vmem:[#allocation5 + $0x90] sm:$0xff]
    %v289 = vld [vmem:[#allocation5 + $0x98] sm:$0xff]
    %v290 = vld [vmem:[#allocation5 + $0xa0] sm:$0xff]
    %v291 = vld [vmem:[#allocation5 + $0xa8] sm:$0xff]
    %v292 = vld [vmem:[#allocation5 + $0xb0] sm:$0xff]
    %v293 = vld [vmem:[#allocation5 + $0xb8] sm:$0xff]
    %v294 = vld [vmem:[#allocation5 + $0xc0] sm:$0xff]
    %v295 = vld [vmem:[#allocation5 + $0xc8] sm:$0xff]
    %v296 = vld [vmem:[#allocation5 + $0xd0] sm:$0xff]
    %v297 = vld [vmem:[#allocation5 + $0xd8] sm:$0xff]
    %v298 = vld [vmem:[#allocation5 + $0xe0] sm:$0xff]
    %v299 = vld [vmem:[#allocation5 + $0xe8] sm:$0xff]
    %v300 = vld [vmem:[#allocation5 + $0xf0] sm:$0xff]
    %v301 = vld [vmem:[#allocation5 + $0xf8] sm:$0xff]
    %v302 = vld [vmem:[#allocation5 + $0x100] sm:$0xff]
    %v303 = vld [vmem:[#allocation5 + $0x108] sm:$0xff]
    %v304 = vld [vmem:[#allocation5 + $0x110] sm:$0xff]
    %v305 = vld [vmem:[#allocation5 + $0x118] sm:$0xff]
    %v306 = vld [vmem:[#allocation5 + $0x120] sm:$0xff]
    %v307 = vld [vmem:[#allocation5 + $0x128] sm:$0xff]
    %v308 = vld [vmem:[#allocation5 + $0x130] sm:$0xff]
    %v309 = vld [vmem:[#allocation5 + $0x138] sm:$0xff]
    %v310 = vld [vmem:[#allocation5 + $0x140] sm:$0xff]
    %v311 = vld [vmem:[#allocation5 + $0x148] sm:$0xff]
    %v312 = vld [vmem:[#allocation5 + $0x150] sm:$0xff]
    %v313 = vld [vmem:[#allocation5 + $0x158] sm:$0xff]
    %v314 = vld [vmem:[#allocation5 + $0x160] sm:$0xff]
    %v315 = vld [vmem:[#allocation5 + $0x168] sm:$0xff]
    %v316 = vld [vmem:[#allocation5 + $0x170] sm:$0xff]
    %v317 = vld [vmem:[#allocation5 + $0x178] sm:$0xff]
    %v318 = vld [vmem:[#allocation5 + $0x180] sm:$0xff]
    %v319 = vld [vmem:[#allocation5 + $0x188] sm:$0xff]
    %v320 = vld [vmem:[#allocation5 + $0x190] sm:$0xff]
    %v321 = vld [vmem:[#allocation5 + $0x198] sm:$0xff]
    %v322 = vld [vmem:[#allocation5 + $0x1a0] sm:$0xff]
    %v323 = vld [vmem:[#allocation5 + $0x1a8] sm:$0xff]
    %v324 = vld [vmem:[#allocation5 + $0x1b0] sm:$0xff]
    %v325 = vld [vmem:[#allocation5 + $0x1b8] sm:$0xff]
    %v326 = vld [vmem:[#allocation5 + $0x1c0] sm:$0xff]
    %v327 = vld [vmem:[#allocation5 + $0x1c8] sm:$0xff]
    %v328 = vld [vmem:[#allocation5 + $0x1d0] sm:$0xff]
    %v329 = vld [vmem:[#allocation5 + $0x1d8] sm:$0xff]
    %v330 = vld [vmem:[#allocation5 + $0x1e0] sm:$0xff]
    %v331 = vld [vmem:[#allocation5 + $0x1e8] sm:$0xff]
    %v332 = vld [vmem:[#allocation5 + $0x1f0] sm:$0xff]
    %v333 = vld [vmem:[#allocation5 + $0x1f8] sm:$0xff]
    %v334 = vld [vmem:[%s4] sm:$0x3]
    %v336 = vlaneseq
    %v337 = vshrl.u32 %v336, 7
    %v338 = vsub.s32 0, %v337
    %v339 = vrot.slane %v334, %v338
    %v340 = vlaneseq
    %v341 = vshrl.u32 %v340, 7
    %v342 = vsub.s32 1, %v341
    %v343 = vrot.slane %v334, %v342
    %v410 = vunpack.c.l.b16 %v270
    %v411 = vunpack.c.h.b16 %v270
    %v412 = vunpack.c.l.b16 %v271
    %v413 = vunpack.c.h.b16 %v271
    %v414 = vunpack.c.l.b16 %v272
    %v415 = vunpack.c.h.b16 %v272
    %v416 = vunpack.c.l.b16 %v273
    %v417 = vunpack.c.h.b16 %v273
    %v418 = vunpack.c.l.b16 %v274
    %v419 = vunpack.c.h.b16 %v274
    %v420 = vunpack.c.l.b16 %v275
    %v421 = vunpack.c.h.b16 %v275
    %v422 = vunpack.c.l.b16 %v276
    %v423 = vunpack.c.h.b16 %v276
    %v424 = vunpack.c.l.b16 %v277
    %v425 = vunpack.c.h.b16 %v277
    %v426 = vunpack.c.l.b16 %v278
    %v427 = vunpack.c.h.b16 %v278
    %v428 = vunpack.c.l.b16 %v279
    %v429 = vunpack.c.h.b16 %v279
    %v430 = vunpack.c.l.b16 %v280
    %v431 = vunpack.c.h.b16 %v280
    %v432 = vunpack.c.l.b16 %v281
    %v433 = vunpack.c.h.b16 %v281
    %v434 = vunpack.c.l.b16 %v282
    %v435 = vunpack.c.h.b16 %v282
    %v436 = vunpack.c.l.b16 %v283
    %v437 = vunpack.c.h.b16 %v283
    %v438 = vunpack.c.l.b16 %v284
    %v439 = vunpack.c.h.b16 %v284
    %v440 = vunpack.c.l.b16 %v285
    %v441 = vunpack.c.h.b16 %v285
    %v442 = vunpack.c.l.b16 %v286
    %v443 = vunpack.c.h.b16 %v286
    %v444 = vunpack.c.l.b16 %v287
    %v445 = vunpack.c.h.b16 %v287
    %v446 = vunpack.c.l.b16 %v288
    %v447 = vunpack.c.h.b16 %v288
    %v448 = vunpack.c.l.b16 %v289
    %v449 = vunpack.c.h.b16 %v289
    %v450 = vunpack.c.l.b16 %v290
    %v451 = vunpack.c.h.b16 %v290
    %v452 = vunpack.c.l.b16 %v291
    %v453 = vunpack.c.h.b16 %v291
    %v454 = vunpack.c.l.b16 %v292
    %v455 = vunpack.c.h.b16 %v292
    %v456 = vunpack.c.l.b16 %v293
    %v457 = vunpack.c.h.b16 %v293
    %v458 = vunpack.c.l.b16 %v294
    %v459 = vunpack.c.h.b16 %v294
    %v460 = vunpack.c.l.b16 %v295
    %v461 = vunpack.c.h.b16 %v295
    %v462 = vunpack.c.l.b16 %v296
    %v463 = vunpack.c.h.b16 %v296
    %v464 = vunpack.c.l.b16 %v297
    %v465 = vunpack.c.h.b16 %v297
    %v466 = vunpack.c.l.b16 %v298
    %v467 = vunpack.c.h.b16 %v298
    %v468 = vunpack.c.l.b16 %v299
    %v469 = vunpack.c.h.b16 %v299
    %v470 = vunpack.c.l.b16 %v300
    %v471 = vunpack.c.h.b16 %v300
    %v472 = vunpack.c.l.b16 %v301
    %v473 = vunpack.c.h.b16 %v301
    %v474 = vunpack.c.l.b16 %v302
    %v475 = vunpack.c.h.b16 %v302
    %v476 = vunpack.c.l.b16 %v303
    %v477 = vunpack.c.h.b16 %v303
    %v478 = vunpack.c.l.b16 %v304
    %v479 = vunpack.c.h.b16 %v304
    %v480 = vunpack.c.l.b16 %v305
    %v481 = vunpack.c.h.b16 %v305
    %v482 = vunpack.c.l.b16 %v306
    %v483 = vunpack.c.h.b16 %v306
    %v484 = vunpack.c.l.b16 %v307
    %v485 = vunpack.c.h.b16 %v307
    %v486 = vunpack.c.l.b16 %v308
    %v487 = vunpack.c.h.b16 %v308
    %v488 = vunpack.c.l.b16 %v309
    %v489 = vunpack.c.h.b16 %v309
    %v490 = vunpack.c.l.b16 %v310
    %v491 = vunpack.c.h.b16 %v310
    %v492 = vunpack.c.l.b16 %v311
    %v493 = vunpack.c.h.b16 %v311
    %v494 = vunpack.c.l.b16 %v312
    %v495 = vunpack.c.h.b16 %v312
    %v496 = vunpack.c.l.b16 %v313
    %v497 = vunpack.c.h.b16 %v313
    %v498 = vunpack.c.l.b16 %v314
    %v499 = vunpack.c.h.b16 %v314
    %v500 = vunpack.c.l.b16 %v315
    %v501 = vunpack.c.h.b16 %v315
    %v502 = vunpack.c.l.b16 %v316
    %v503 = vunpack.c.h.b16 %v316
    %v504 = vunpack.c.l.b16 %v317
    %v505 = vunpack.c.h.b16 %v317
    %v506 = vunpack.c.l.b16 %v318
    %v507 = vunpack.c.h.b16 %v318
    %v508 = vunpack.c.l.b16 %v319
    %v509 = vunpack.c.h.b16 %v319
    %v510 = vunpack.c.l.b16 %v320
    %v511 = vunpack.c.h.b16 %v320
    %v512 = vunpack.c.l.b16 %v321
    %v513 = vunpack.c.h.b16 %v321
    %v514 = vunpack.c.l.b16 %v322
    %v515 = vunpack.c.h.b16 %v322
    %v516 = vunpack.c.l.b16 %v323
    %v517 = vunpack.c.h.b16 %v323
    %v518 = vunpack.c.l.b16 %v324
    %v519 = vunpack.c.h.b16 %v324
    %v520 = vunpack.c.l.b16 %v325
    %v521 = vunpack.c.h.b16 %v325
    %v522 = vunpack.c.l.b16 %v326
    %v523 = vunpack.c.h.b16 %v326
    %v524 = vunpack.c.l.b16 %v327
    %v525 = vunpack.c.h.b16 %v327
    %v526 = vunpack.c.l.b16 %v328
    %v527 = vunpack.c.h.b16 %v328
    %v528 = vunpack.c.l.b16 %v329
    %v529 = vunpack.c.h.b16 %v329
    %v530 = vunpack.c.l.b16 %v330
    %v531 = vunpack.c.h.b16 %v330
    %v532 = vunpack.c.l.b16 %v331
    %v533 = vunpack.c.h.b16 %v331
    %v534 = vunpack.c.l.b16 %v332
    %v535 = vunpack.c.h.b16 %v332
    %v536 = vunpack.c.l.b16 %v333
    %v537 = vunpack.c.h.b16 %v333
    %v538 = vpack.c.b16 %v412, %v410
    %v539 = vpack.c.b16 %v413, %v411
    %v540 = vpack.c.b16 %v416, %v414
    %v541 = vpack.c.b16 %v417, %v415
    %v542 = vpack.c.b16 %v420, %v418
    %v543 = vpack.c.b16 %v421, %v419
    %v544 = vpack.c.b16 %v424, %v422
    %v545 = vpack.c.b16 %v425, %v423
    %v546 = vpack.c.b16 %v428, %v426
    %v547 = vpack.c.b16 %v429, %v427
    %v548 = vpack.c.b16 %v432, %v430
    %v549 = vpack.c.b16 %v433, %v431
    %v550 = vpack.c.b16 %v436, %v434
    %v551 = vpack.c.b16 %v437, %v435
    %v552 = vpack.c.b16 %v440, %v438
    %v553 = vpack.c.b16 %v441, %v439
    %v554 = vpack.c.b16 %v444, %v442
    %v555 = vpack.c.b16 %v445, %v443
    %v556 = vpack.c.b16 %v448, %v446
    %v557 = vpack.c.b16 %v449, %v447
    %v558 = vpack.c.b16 %v452, %v450
    %v559 = vpack.c.b16 %v453, %v451
    %v560 = vpack.c.b16 %v456, %v454
    %v561 = vpack.c.b16 %v457, %v455
    %v562 = vpack.c.b16 %v460, %v458
    %v563 = vpack.c.b16 %v461, %v459
    %v564 = vpack.c.b16 %v464, %v462
    %v565 = vpack.c.b16 %v465, %v463
    %v566 = vpack.c.b16 %v468, %v466
    %v567 = vpack.c.b16 %v469, %v467
    %v568 = vpack.c.b16 %v472, %v470
    %v569 = vpack.c.b16 %v473, %v471
    %v570 = vpack.c.b16 %v476, %v474
    %v571 = vpack.c.b16 %v477, %v475
    %v572 = vpack.c.b16 %v480, %v478
    %v573 = vpack.c.b16 %v481, %v479
    %v574 = vpack.c.b16 %v484, %v482
    %v575 = vpack.c.b16 %v485, %v483
    %v576 = vpack.c.b16 %v488, %v486
    %v577 = vpack.c.b16 %v489, %v487
    %v578 = vpack.c.b16 %v492, %v490
    %v579 = vpack.c.b16 %v493, %v491
    %v580 = vpack.c.b16 %v496, %v494
    %v581 = vpack.c.b16 %v497, %v495
    %v582 = vpack.c.b16 %v500, %v498
    %v583 = vpack.c.b16 %v501, %v499
    %v584 = vpack.c.b16 %v504, %v502
    %v585 = vpack.c.b16 %v505, %v503
    %v586 = vpack.c.b16 %v508, %v506
    %v587 = vpack.c.b16 %v509, %v507
    %v588 = vpack.c.b16 %v512, %v510
    %v589 = vpack.c.b16 %v513, %v511
    %v590 = vpack.c.b16 %v516, %v514
    %v591 = vpack.c.b16 %v517, %v515
    %v592 = vpack.c.b16 %v520, %v518
    %v593 = vpack.c.b16 %v521, %v519
    %v594 = vpack.c.b16 %v524, %v522
    %v595 = vpack.c.b16 %v525, %v523
    %v596 = vpack.c.b16 %v528, %v526
    %v597 = vpack.c.b16 %v529, %v527
    %v598 = vpack.c.b16 %v532, %v530
    %v599 = vpack.c.b16 %v533, %v531
    %v600 = vpack.c.b16 %v536, %v534
    %v601 = vpack.c.b16 %v537, %v535
    %666 = vmatprep.subr.bf16.mxu0 %v539
    %667 = vmatpush1.bf16.msra.mxu0 %v538
    %668 = vmatprep.subr.bf16.mxu0 %v541
    %669 = vmatpush1.bf16.msra.mxu0 %v540
    %670 = vmatprep.subr.bf16.mxu0 %v543
    %671 = vmatpush1.bf16.msra.mxu0 %v542
    %672 = vmatprep.subr.bf16.mxu0 %v545
    %673 = vmatpush1.bf16.msra.mxu0 %v544
    %674 = vmatprep.subr.bf16.mxu0 %v547
    %675 = vmatpush1.bf16.msra.mxu0 %v546
    %676 = vmatprep.subr.bf16.mxu0 %v549
    %677 = vmatpush1.bf16.msra.mxu0 %v548
    %678 = vmatprep.subr.bf16.mxu0 %v551
    %679 = vmatpush1.bf16.msra.mxu0 %v550
    %680 = vmatprep.subr.bf16.mxu0 %v553
    %681 = vmatpush1.bf16.msra.mxu0 %v552
    %682 = vmatprep.subr.bf16.mxu0 %v555
    %683 = vmatpush1.bf16.msra.mxu0 %v554
    %684 = vmatprep.subr.bf16.mxu0 %v557
    %685 = vmatpush1.bf16.msra.mxu0 %v556
    %686 = vmatprep.subr.bf16.mxu0 %v559
    %687 = vmatpush1.bf16.msra.mxu0 %v558
    %688 = vmatprep.subr.bf16.mxu0 %v561
    %689 = vmatpush1.bf16.msra.mxu0 %v560
    %690 = vmatprep.subr.bf16.mxu0 %v563
    %691 = vmatpush1.bf16.msra.mxu0 %v562
    %692 = vmatprep.subr.bf16.mxu0 %v565
    %693 = vmatpush1.bf16.msra.mxu0 %v564
    %694 = vmatprep.subr.bf16.mxu0 %v567
    %695 = vmatpush1.bf16.msra.mxu0 %v566
    %696 = vmatprep.subr.bf16.mxu0 %v569
    %697 = vmatpush1.bf16.msra.mxu0 %v568
    %698 = vmatprep.mubr.bf16.mxu0 %v267
    %699 = vmatmul.mubr.bf16.gmra.mrb[0].mxu0 %v266
    %v700 = vpop.f32.mrb[0].mxu0
    %v701 = vadd.f32 %v339, %v700
    %v702 = vpop.f32.mrb[0].mxu0
    %v703 = vadd.f32 %v343, %v702
    %v704 = vpop.f32.mrb[0].mxu0
    %v705 = vpop.f32.mrb[0].mxu0
    %706 = vdwg.mxu0
    %707 = vmatprep.subr.bf16.mxu0 %v571
    %708 = vmatpush1.bf16.msra.mxu0 %v570
    %709 = vmatprep.subr.bf16.mxu0 %v573
    %710 = vmatpush1.bf16.msra.mxu0 %v572
    %711 = vmatprep.subr.bf16.mxu0 %v575
    %712 = vmatpush1.bf16.msra.mxu0 %v574
    %713 = vmatprep.subr.bf16.mxu0 %v577
    %714 = vmatpush1.bf16.msra.mxu0 %v576
    %715 = vmatprep.subr.bf16.mxu0 %v579
    %716 = vmatpush1.bf16.msra.mxu0 %v578
    %717 = vmatprep.subr.bf16.mxu0 %v581
    %718 = vmatpush1.bf16.msra.mxu0 %v580
    %719 = vmatprep.subr.bf16.mxu0 %v583
    %720 = vmatpush1.bf16.msra.mxu0 %v582
    %721 = vmatprep.subr.bf16.mxu0 %v585
    %722 = vmatpush1.bf16.msra.mxu0 %v584
    %723 = vmatprep.subr.bf16.mxu0 %v587
    %724 = vmatpush1.bf16.msra.mxu0 %v586
    %725 = vmatprep.subr.bf16.mxu0 %v589
    %726 = vmatpush1.bf16.msra.mxu0 %v588
    %727 = vmatprep.subr.bf16.mxu0 %v591
    %728 = vmatpush1.bf16.msra.mxu0 %v590
    %729 = vmatprep.subr.bf16.mxu0 %v593
    %730 = vmatpush1.bf16.msra.mxu0 %v592
    %731 = vmatprep.subr.bf16.mxu0 %v595
    %732 = vmatpush1.bf16.msra.mxu0 %v594
    %733 = vmatprep.subr.bf16.mxu0 %v597
    %734 = vmatpush1.bf16.msra.mxu0 %v596
    %735 = vmatprep.subr.bf16.mxu0 %v599
    %736 = vmatpush1.bf16.msra.mxu0 %v598
    %737 = vmatprep.subr.bf16.mxu0 %v601
    %738 = vmatpush1.bf16.msra.mxu0 %v600
    %739 = vmatprep.mubr.bf16.mxu0 %v269
    %740 = vmatmul.mubr.bf16.gmra.mrb[0].mxu0 %v268
    %v741 = vpop.f32.mrb[0].mxu0
    %v742 = vadd.f32 %v701, %v741
    %v743 = vpop.f32.mrb[0].mxu0
    %v744 = vadd.f32 %v703, %v743
    %v745 = vpop.f32.mrb[0].mxu0
    %v746 = vpop.f32.mrb[0].mxu0
    %747 = vdwg.mxu0
    %v748 = vmax.f32 %v742, 0.0
    %v749 = vmax.f32 %v744, 0.0
    %v750 = vld [vmem:[%s5] sm:$0x3]
    %v752 = vlaneseq
    %v753 = vshrl.u32 %v752, 7
    %v754 = vsub.s32 0, %v753
    %v755 = vrot.slane %v750, %v754
    %v756 = vlaneseq
    %v757 = vshrl.u32 %v756, 7
    %v758 = vsub.s32 1, %v757
    %v759 = vrot.slane %v750, %v758
    %v762 = vmul.f32 %v748, %v755
    %v763 = vmul.f32 %v749, %v759
    %v764 = vadd.f32 %v762, %v763
    %765 = vadd.xlane.f32.xlu0 %v764
    %v766 = vpop.xlane.xlu0 %765
    %v767 = vld [vmem:[#allocation2] sm:$0x1]
    %v769 = vlaneseq
    %v770 = vshrl.u32 %v769, 7
    %v771 = vsub.s32 0, %v770
    %v772 = vrot.slane %v767, %v771
    %v774 = vadd.f32 %v766, %v772
    %vm775 = vcmask 7168
    %776 = vst.msk [vmem:[%s7] sm:$0xff] %vm775, %v774
    // Predicated region
    $region38: #{soft_q_forward.1} parent=1 // pred_check
      _
    $region39: #{soft_q_forward.1} parent=1 // pred_check_branch
      %778 = sbr.rel (0) target = $region41
    $region40: #{soft_q_forward.1} parent=1 // pred_region
      _
    $region41: #{soft_q_forward.1} parent=1 // pred_fallthru
      _
    // Predicated region
    $region42: #{soft_q_forward.1} parent=1 // pred_check
      _
    $region43: #{soft_q_forward.1} parent=1 // pred_check_branch
      %780 = sbr.rel (0) target = $region45
    $region44: #{soft_q_forward.1} parent=1 // pred_region
      _
    $region45: #{soft_q_forward.1} parent=1 // pred_fallthru
      _
    %781 = vsyncpa [#allocation4], 1
    %782 = vsyncpa [#allocation6], 1

</llo_original>
